<compile_context>
chip_gen: v7x
topology: tpu7x:2x2x1
jax: 0.10.0
libtpu: 0.0.40
codegen_flags: <defaults>
</compile_context>

<pallas_src>
import functools
import math

import jax
import jax.numpy as jnp
from jax import lax
from jax.experimental import pallas as pl
from jax.experimental.pallas import tpu as pltpu

LN_EPS = 1e-5
NEG_INF = -1e30  # finite mask value (avoids -inf - -inf NaN hazards)


def _layer_norm(v, gamma, beta):
    mu = jnp.mean(v, axis=-1, keepdims=True)
    var = jnp.mean((v - mu) ** 2, axis=-1, keepdims=True)
    return (v - mu) * lax.rsqrt(var + LN_EPS) * gamma + beta


def _clamp_vmem(nbytes):
    lo, hi = 32 * 1024 * 1024, 100 * 1024 * 1024
    return int(min(max(nbytes, lo), hi))


# --------------------------- Kernel A: LN1 + QKV ---------------------------
def _ln_qkv_kernel(x_ref, g1_ref, b1_ref, wqkv_ref, bqkv_ref,
                   q_ref, k_ref, v_ref, *, num_head, d_head, scale):
    x = x_ref[...].astype(jnp.float32)                       # [tr, D]
    y1 = _layer_norm(x, g1_ref[...], b1_ref[...])
    qkv = jnp.dot(y1, wqkv_ref[...],
                  preferred_element_type=jnp.float32) + bqkv_ref[...]
    d_model = num_head * d_head
    # Write heads head-major so kernel B gets [H, t, d_head] blocks directly.
    for h in range(num_head):
        lo = h * d_head
        q_ref[h, :, :] = (qkv[:, lo:lo + d_head] * scale).astype(q_ref.dtype)
        k_ref[h, :, :] = qkv[:, d_model + lo:d_model + lo + d_head].astype(k_ref.dtype)
        v_ref[h, :, :] = qkv[:, 2 * d_model + lo:2 * d_model + lo + d_head].astype(v_ref.dtype)


# ------------- Kernel B: flash causal attention + out-proj + FFN ------------
def _attn_ffn_kernel(q_ref, k_ref, v_ref, x_ref,
                     wout_ref, bout_ref, g2_ref, b2_ref,
                     w1_ref, bf1_ref, w2_ref, bf2_ref,
                     o_ref,
                     m_ref, l_ref, acc_ref, slab_ref,
                     *, num_head, d_head, tq, tk):
    qi = pl.program_id(1)
    ki = pl.program_id(2)

    @pl.when(ki == 0)
    def _init():
        m_ref[...] = jnp.full(m_ref.shape, NEG_INF, jnp.float32)
        l_ref[...] = jnp.zeros(l_ref.shape, jnp.float32)
        acc_ref[...] = jnp.zeros(acc_ref.shape, jnp.float32)

    # Skip KV tiles that are entirely above the causal diagonal.
    @pl.when(ki * tk <= qi * tq + (tq - 1))
    def _update():
        q = q_ref[...].astype(jnp.float32)                   # [H, tq, dh] (pre-scaled)
        k = k_ref[...].astype(jnp.float32)                   # [H, tk, dh]
        v = v_ref[...].astype(jnp.float32)                   # [H, tk, dh]
        s = jnp.einsum("hqd,hkd->hqk", q, k,
                       preferred_element_type=jnp.float32)   # [H, tq, tk]
        rows = qi * tq + lax.broadcasted_iota(jnp.int32, (tq, tk), 0)
        cols = ki * tk + lax.broadcasted_iota(jnp.int32, (tq, tk), 1)
        s = jnp.where((cols <= rows)[None, :, :], s, NEG_INF)

        m_prev = m_ref[...]
        m_new = jnp.maximum(m_prev, jnp.max(s, axis=-1, keepdims=True))
        alpha = jnp.exp(m_prev - m_new)
        p = jnp.exp(s - m_new)
        l_ref[...] = alpha * l_ref[...] + jnp.sum(p, axis=-1, keepdims=True)
        acc_ref[...] = alpha * acc_ref[...] + jnp.einsum(
            "hqk,hkd->hqd", p, v, preferred_element_type=jnp.float32)
        m_ref[...] = m_new

    @pl.when(ki == pl.num_programs(2) - 1)
    def _epilogue():
        inv_l = pl.reciprocal(l_ref[...], approx=True)       # [H, tq, 1] (EUP)
        # Write normalized head outputs straight into a [tq, D] slab.
        for h in range(num_head):
            slab_ref[:, h * d_head:(h + 1) * d_head] = acc_ref[h] * inv_l[h]
        attn = slab_ref[...]                                  # [tq, D]
        mha = jnp.dot(attn, wout_ref[...],
                      preferred_element_type=jnp.float32) + bout_ref[...]
        x1 = x_ref[...].astype(jnp.float32) + mha
        y2 = _layer_norm(x1, g2_ref[...], b2_ref[...])
        hdn = jnp.dot(y2, w1_ref[...],
                      preferred_element_type=jnp.float32) + bf1_ref[...]
        hdn = jnp.maximum(hdn, 0.0)
        ff = jnp.dot(hdn, w2_ref[...],
                     preferred_element_type=jnp.float32) + bf2_ref[...]
        o_ref[...] = (x1 + ff).astype(o_ref.dtype)


# --------------------------------- wrapper ---------------------------------
def transformer_layer(x_tbd, params, num_head, *, q_tile=128, kv_tile=128,
                      row_tile=256):
    """x_tbd: [seq_len, batch, d_model] float32 -> same shape."""
    T, B, D = x_tbd.shape
    F = params["w1"].shape[1]
    assert D % num_head == 0
    dh = D // num_head
    scale = 1.0 / math.sqrt(dh)

    tq = min(q_tile, T)
    tk = min(kv_tile, T)
    tr = min(row_tile, T)
    assert T % tq == 0 and T % tk == 0 and T % tr == 0, "seq_len must divide tiles"

    x_btd = jnp.transpose(x_tbd, (1, 0, 2))  # [B, T, D]

    # ---- kernel A: LN1 + QKV projection, head-major outputs ----
    elems_a = 2 * (tr * D + 3 * tr * D) + 2 * (3 * D * D + 5 * D)
    qkv_shape = jax.ShapeDtypeStruct((B, num_head, T, dh), jnp.float32)
    q, k, v = pl.pallas_call(
        functools.partial(_ln_qkv_kernel, num_head=num_head, d_head=dh,
                          scale=scale),
        out_shape=(qkv_shape, qkv_shape, qkv_shape),
        grid=(B, T // tr),
        in_specs=[
            pl.BlockSpec((None, tr, D), lambda b, ri: (b, ri, 0)),
            pl.BlockSpec((1, D), lambda b, ri: (0, 0)),
            pl.BlockSpec((1, D), lambda b, ri: (0, 0)),
            pl.BlockSpec((D, 3 * D), lambda b, ri: (0, 0)),
            pl.BlockSpec((1, 3 * D), lambda b, ri: (0, 0)),
        ],
        out_specs=(
            pl.BlockSpec((None, num_head, tr, dh), lambda b, ri: (b, 0, ri, 0)),
            pl.BlockSpec((None, num_head, tr, dh), lambda b, ri: (b, 0, ri, 0)),
            pl.BlockSpec((None, num_head, tr, dh), lambda b, ri: (b, 0, ri, 0)),
        ),
        compiler_params=pltpu.CompilerParams(
            dimension_semantics=("parallel", "parallel"),
            vmem_limit_bytes=_clamp_vmem(4 * elems_a + (8 << 20))),
    )(x_btd, params["g1"], params["b1"], params["wqkv"], params["bqkv"])

    # ---- kernel B: flash attention + out-proj + residual + LN2 + FFN ----
    const3 = lambda b, qi, ki: (0, 0)
    elems_b = (2 * (3 * max(tq, tk) * D + 2 * tq * D)
               + 2 * (D * D + D * F + F * D + 2 * F + 4 * D)
               + (2 * num_head * tq + tq * D + tq * D))
    out_btd = pl.pallas_call(
        functools.partial(_attn_ffn_kernel, num_head=num_head, d_head=dh,
                          tq=tq, tk=tk),
        out_shape=jax.ShapeDtypeStruct((B, T, D), x_tbd.dtype),
        grid=(B, T // tq, T // tk),
        in_specs=[
            pl.BlockSpec((None, num_head, tq, dh), lambda b, qi, ki: (b, 0, qi, 0)),
            pl.BlockSpec((None, num_head, tk, dh), lambda b, qi, ki: (b, 0, ki, 0)),
            pl.BlockSpec((None, num_head, tk, dh), lambda b, qi, ki: (b, 0, ki, 0)),
            pl.BlockSpec((None, tq, D), lambda b, qi, ki: (b, qi, 0)),
            pl.BlockSpec((D, D), const3), pl.BlockSpec((1, D), const3),
            pl.BlockSpec((1, D), const3), pl.BlockSpec((1, D), const3),
            pl.BlockSpec((D, F), const3), pl.BlockSpec((1, F), const3),
            pl.BlockSpec((F, D), const3), pl.BlockSpec((1, D), const3),
        ],
        out_specs=pl.BlockSpec((None, tq, D), lambda b, qi, ki: (b, qi, 0)),
        scratch_shapes=[
            pltpu.VMEM((num_head, tq, 1), jnp.float32),   # running max
            pltpu.VMEM((num_head, tq, 1), jnp.float32),   # running denom
            pltpu.VMEM((num_head, tq, dh), jnp.float32),  # running numerator
            pltpu.VMEM((tq, D), jnp.float32),             # head-merge slab
        ],
        compiler_params=pltpu.CompilerParams(
            dimension_semantics=("parallel", "parallel", "arbitrary"),
            vmem_limit_bytes=_clamp_vmem(4 * elems_b + (8 << 20))),
    )(q, k, v, x_btd,
      params["wout"], params["bout"], params["g2"], params["b2"],
      params["w1"], params["bf1"], params["w2"], params["bf2"])

    return jnp.transpose(out_btd, (1, 0, 2))


# ------------------------- pure-JAX reference -------------------------
def _reference(x_tbd, params, num_head):
    T, B, D = x_tbd.shape
    d_head = D // num_head
    scale = 1.0 / math.sqrt(d_head)

    def ln(v, g, b):
        mu = jnp.mean(v, axis=-1, keepdims=True)
        var = jnp.mean((v - mu) ** 2, axis=-1, keepdims=True)
        return (v - mu) / jnp.sqrt(var + LN_EPS) * g[0] + b[0]

    y1 = ln(x_tbd, params["g1"], params["b1"])
    qkv = y1 @ params["wqkv"] + params["bqkv"][0]                    # [T, B, 3D]
    qkv = qkv.reshape(T, B, 3, num_head, d_head)
    qkv = jnp.transpose(qkv, (2, 1, 3, 0, 4))                        # [3, B, H, T, dh]
    q, k, v = qkv[0], qkv[1], qkv[2]
    score = jnp.einsum("bhtd,bhsd->bhts", q, k) * scale
    mask = jnp.triu(jnp.full((T, T), -jnp.inf), k=1)
    score = score + mask
    attn = jax.nn.softmax(score, axis=-1)
    av = jnp.einsum("bhts,bhsd->bhtd", attn, v)                      # [B, H, T, dh]
    av = jnp.transpose(av, (2, 0, 1, 3)).reshape(T, B, D)
    mha = av @ params["wout"] + params["bout"][0]
    x1 = x_tbd + mha
    y2 = ln(x1, params["g2"], params["b2"])
    h = jax.nn.relu(y2 @ params["w1"] + params["bf1"][0])
    ff = h @ params["w2"] + params["bf2"][0]
    return x1 + ff


if __name__ == "__main__":
    seq_len, batch, d_model, num_head, ff_dim = 8, 2, 32, 4, 64

    key = jax.random.PRNGKey(0)
    ks = jax.random.split(key, 8)

    def init_w(k, shape, fan_in):
        bound = 1.0 / math.sqrt(fan_in)
        return jax.random.uniform(k, shape, jnp.float32, -bound, bound)

    params = {
        "g1": jnp.ones((1, d_model), jnp.float32),
        "b1": jnp.zeros((1, d_model), jnp.float32),
        "wqkv": init_w(ks[0], (d_model, 3 * d_model), d_model),
        "bqkv": init_w(ks[1], (1, 3 * d_model), d_model),
        "wout": init_w(ks[2], (d_model, d_model), d_model),
        "bout": init_w(ks[3], (1, d_model), d_model),
        "g2": jnp.ones((1, d_model), jnp.float32),
        "b2": jnp.zeros((1, d_model), jnp.float32),
        "w1": init_w(ks[4], (d_model, ff_dim), d_model),
        "bf1": init_w(ks[5], (1, ff_dim), d_model),
        "w2": init_w(ks[6], (ff_dim, d_model), ff_dim),
        "bf2": init_w(ks[7], (1, d_model), ff_dim),
    }

    x = jax.random.normal(jax.random.PRNGKey(42), (seq_len, batch, d_model),
                          jnp.float32)

    out = transformer_layer(x, params, num_head)
    out = jax.block_until_ready(out)

    ref = _reference(x, params, num_head)
    assert out.shape == (seq_len, batch, d_model)
    # Tolerance slightly loosened for the approximate (EUP) softmax reciprocal.
    assert jnp.allclose(out, ref, atol=5e-3, rtol=5e-3), "mismatch vs reference"

    print("KERNEL_OK")
</pallas_src>

<mosaic_0001>
module attributes {stable_mosaic.version = 11 : i64} {
  func.func @_ln_qkv_kernel(%arg0: i32, %arg1: i32, %arg2: memref<1x8x32xf32, #tpu.memory_space<vmem>>, %arg3: memref<1x32xf32, #tpu.memory_space<vmem>>, %arg4: memref<1x32xf32, #tpu.memory_space<vmem>>, %arg5: memref<32x96xf32, #tpu.memory_space<vmem>>, %arg6: memref<1x96xf32, #tpu.memory_space<vmem>>, %arg7: memref<1x4x8x8xf32, #tpu.memory_space<vmem>>, %arg8: memref<1x4x8x8xf32, #tpu.memory_space<vmem>>, %arg9: memref<1x4x8x8xf32, #tpu.memory_space<vmem>>) attributes {dimension_semantics = [#tpu.dimension_semantics<parallel>, #tpu.dimension_semantics<parallel>], iteration_bounds = array<i64: 2, 1>, scalar_prefetch = 0 : i64, scratch_operands = 0 : i64, tpu.core_type = #tpu.core_type<tc>, window_params = [{transform_indices = @transform_0, window_bounds = array<i64: 1, 8, 32>}, {pipeline_mode = #tpu.pipeline_mode<synchronous>, transform_indices = @transform_1, window_bounds = array<i64: 1, 32>}, {pipeline_mode = #tpu.pipeline_mode<synchronous>, transform_indices = @transform_2, window_bounds = array<i64: 1, 32>}, {pipeline_mode = #tpu.pipeline_mode<synchronous>, transform_indices = @transform_3, window_bounds = array<i64: 32, 96>}, {pipeline_mode = #tpu.pipeline_mode<synchronous>, transform_indices = @transform_4, window_bounds = array<i64: 1, 96>}, {transform_indices = @transform_5, window_bounds = array<i64: 1, 4, 8, 8>}, {transform_indices = @transform_6, window_bounds = array<i64: 1, 4, 8, 8>}, {transform_indices = @transform_7, window_bounds = array<i64: 1, 4, 8, 8>}]} {
    %c0 = arith.constant 0 : index
    %c0_0 = arith.constant 0 : index
    %c0_1 = arith.constant 0 : index
    %0 = vector.load %arg2[%c0, %c0_0, %c0_1] : memref<1x8x32xf32, #tpu.memory_space<vmem>>, vector<1x8x32xf32>
    %1 = vector.shape_cast %0 : vector<1x8x32xf32> to vector<8x32xf32>
    %c0_2 = arith.constant 0 : index
    %c0_3 = arith.constant 0 : index
    %2 = vector.load %arg3[%c0_2, %c0_3] : memref<1x32xf32, #tpu.memory_space<vmem>>, vector<1x32xf32>
    %c0_4 = arith.constant 0 : index
    %c0_5 = arith.constant 0 : index
    %3 = vector.load %arg4[%c0_4, %c0_5] : memref<1x32xf32, #tpu.memory_space<vmem>>, vector<1x32xf32>
    %cst = arith.constant dense<0.000000e+00> : vector<8xf32>
    %4 = vector.multi_reduction <add>, %1, %cst [1] : vector<8x32xf32> to vector<8xf32>
    %5 = vector.shape_cast %4 : vector<8xf32> to vector<8x1xf32>
    %cst_6 = arith.constant 3.200000e+01 : f32
    %6 = vector.broadcast %cst_6 : f32 to vector<8x1xf32>
    %7 = arith.divf %5, %6 : vector<8x1xf32>
    %8 = vector.broadcast %7 : vector<8x1xf32> to vector<8x32xf32>
    %9 = arith.subf %1, %8 : vector<8x32xf32>
    %10 = arith.mulf %9, %9 : vector<8x32xf32>
    %cst_7 = arith.constant dense<0.000000e+00> : vector<8xf32>
    %11 = vector.multi_reduction <add>, %10, %cst_7 [1] : vector<8x32xf32> to vector<8xf32>
    %12 = vector.shape_cast %11 : vector<8xf32> to vector<8x1xf32>
    %cst_8 = arith.constant 3.200000e+01 : f32
    %13 = vector.broadcast %cst_8 : f32 to vector<8x1xf32>
    %14 = arith.divf %12, %13 : vector<8x1xf32>
    %15 = vector.broadcast %7 : vector<8x1xf32> to vector<8x32xf32>
    %16 = arith.subf %1, %15 : vector<8x32xf32>
    %cst_9 = arith.constant 9.99999974E-6 : f32
    %17 = vector.broadcast %cst_9 : f32 to vector<8x1xf32>
    %18 = arith.addf %14, %17 : vector<8x1xf32>
    %19 = math.rsqrt %18 : vector<8x1xf32>
    %20 = vector.broadcast %19 : vector<8x1xf32> to vector<8x32xf32>
    %21 = arith.mulf %16, %20 : vector<8x32xf32>
    %22 = vector.broadcast %2 : vector<1x32xf32> to vector<8x32xf32>
    %23 = arith.mulf %21, %22 : vector<8x32xf32>
    %24 = vector.broadcast %3 : vector<1x32xf32> to vector<8x32xf32>
    %25 = arith.addf %23, %24 : vector<8x32xf32>
    %c0_10 = arith.constant 0 : index
    %c0_11 = arith.constant 0 : index
    %26 = vector.load %arg5[%c0_10, %c0_11] : memref<32x96xf32, #tpu.memory_space<vmem>>, vector<32x96xf32>
    %cst_12 = arith.constant dense<0.000000e+00> : vector<8x96xf32>
    %27 = tpu.matmul %25, %26, %cst_12 {dimension_numbers = #tpu.dot_dimension_numbers<[1], [0], [0], [1], [0, 0, 1, 1], [], []>} : vector<8x32xf32>, vector<32x96xf32>, vector<8x96xf32> -> vector<8x96xf32>
    %c0_13 = arith.constant 0 : index
    %c0_14 = arith.constant 0 : index
    %28 = vector.load %arg6[%c0_13, %c0_14] : memref<1x96xf32, #tpu.memory_space<vmem>>, vector<1x96xf32>
    %29 = vector.broadcast %28 : vector<1x96xf32> to vector<8x96xf32>
    %30 = arith.addf %27, %29 : vector<8x96xf32>
    %31 = vector.extract_strided_slice %30 {offsets = [0, 0], sizes = [8, 8], strides = [1, 1]} : vector<8x96xf32> to vector<8x8xf32>
    %cst_15 = arith.constant 0.353553385 : f32
    %32 = vector.broadcast %cst_15 : f32 to vector<8x8xf32>
    %33 = arith.mulf %31, %32 : vector<8x8xf32>
    %c0_16 = arith.constant 0 : index
    %c0_17 = arith.constant 0 : index
    %c0_18 = arith.constant 0 : index
    %c0_19 = arith.constant 0 : index
    %34 = vector.load %arg7[%c0_16, %c0_17, %c0_18, %c0_19] : memref<1x4x8x8xf32, #tpu.memory_space<vmem>>, vector<1x1x8x8xf32>
    %35 = vector.shape_cast %34 : vector<1x1x8x8xf32> to vector<8x8xf32>
    %36 = vector.shape_cast %33 : vector<8x8xf32> to vector<1x1x8x8xf32>
    tpu.vector_store %arg7[%c0_16, %c0_17, %c0_18, %c0_19], %36 {strides = array<i32>} : memref<1x4x8x8xf32, #tpu.memory_space<vmem>>, vector<1x1x8x8xf32>,
    %37 = vector.extract_strided_slice %30 {offsets = [0, 32], sizes = [8, 8], strides = [1, 1]} : vector<8x96xf32> to vector<8x8xf32>
    %c0_20 = arith.constant 0 : index
    %c0_21 = arith.constant 0 : index
    %c0_22 = arith.constant 0 : index
    %c0_23 = arith.constant 0 : index
    %38 = vector.load %arg8[%c0_20, %c0_21, %c0_22, %c0_23] : memref<1x4x8x8xf32, #tpu.memory_space<vmem>>, vector<1x1x8x8xf32>
    %39 = vector.shape_cast %38 : vector<1x1x8x8xf32> to vector<8x8xf32>
    %40 = vector.shape_cast %37 : vector<8x8xf32> to vector<1x1x8x8xf32>
    tpu.vector_store %arg8[%c0_20, %c0_21, %c0_22, %c0_23], %40 {strides = array<i32>} : memref<1x4x8x8xf32, #tpu.memory_space<vmem>>, vector<1x1x8x8xf32>,
    %41 = vector.extract_strided_slice %30 {offsets = [0, 64], sizes = [8, 8], strides = [1, 1]} : vector<8x96xf32> to vector<8x8xf32>
    %c0_24 = arith.constant 0 : index
    %c0_25 = arith.constant 0 : index
    %c0_26 = arith.constant 0 : index
    %c0_27 = arith.constant 0 : index
    %42 = vector.load %arg9[%c0_24, %c0_25, %c0_26, %c0_27] : memref<1x4x8x8xf32, #tpu.memory_space<vmem>>, vector<1x1x8x8xf32>
    %43 = vector.shape_cast %42 : vector<1x1x8x8xf32> to vector<8x8xf32>
    %44 = vector.shape_cast %41 : vector<8x8xf32> to vector<1x1x8x8xf32>
    tpu.vector_store %arg9[%c0_24, %c0_25, %c0_26, %c0_27], %44 {strides = array<i32>} : memref<1x4x8x8xf32, #tpu.memory_space<vmem>>, vector<1x1x8x8xf32>,
    %45 = vector.extract_strided_slice %30 {offsets = [0, 8], sizes = [8, 8], strides = [1, 1]} : vector<8x96xf32> to vector<8x8xf32>
    %cst_28 = arith.constant 0.353553385 : f32
    %46 = vector.broadcast %cst_28 : f32 to vector<8x8xf32>
    %47 = arith.mulf %45, %46 : vector<8x8xf32>
    %c0_29 = arith.constant 0 : index
    %c1 = arith.constant 1 : index
    %c0_30 = arith.constant 0 : index
    %c0_31 = arith.constant 0 : index
    %48 = vector.load %arg7[%c0_29, %c1, %c0_30, %c0_31] : memref<1x4x8x8xf32, #tpu.memory_space<vmem>>, vector<1x1x8x8xf32>
    %49 = vector.shape_cast %48 : vector<1x1x8x8xf32> to vector<8x8xf32>
    %50 = vector.shape_cast %47 : vector<8x8xf32> to vector<1x1x8x8xf32>
    tpu.vector_store %arg7[%c0_29, %c1, %c0_30, %c0_31], %50 {strides = array<i32>} : memref<1x4x8x8xf32, #tpu.memory_space<vmem>>, vector<1x1x8x8xf32>,
    %51 = vector.extract_strided_slice %30 {offsets = [0, 40], sizes = [8, 8], strides = [1, 1]} : vector<8x96xf32> to vector<8x8xf32>
    %c0_32 = arith.constant 0 : index
    %c1_33 = arith.constant 1 : index
    %c0_34 = arith.constant 0 : index
    %c0_35 = arith.constant 0 : index
    %52 = vector.load %arg8[%c0_32, %c1_33, %c0_34, %c0_35] : memref<1x4x8x8xf32, #tpu.memory_space<vmem>>, vector<1x1x8x8xf32>
    %53 = vector.shape_cast %52 : vector<1x1x8x8xf32> to vector<8x8xf32>
    %54 = vector.shape_cast %51 : vector<8x8xf32> to vector<1x1x8x8xf32>
    tpu.vector_store %arg8[%c0_32, %c1_33, %c0_34, %c0_35], %54 {strides = array<i32>} : memref<1x4x8x8xf32, #tpu.memory_space<vmem>>, vector<1x1x8x8xf32>,
    %55 = vector.extract_strided_slice %30 {offsets = [0, 72], sizes = [8, 8], strides = [1, 1]} : vector<8x96xf32> to vector<8x8xf32>
    %c0_36 = arith.constant 0 : index
    %c1_37 = arith.constant 1 : index
    %c0_38 = arith.constant 0 : index
    %c0_39 = arith.constant 0 : index
    %56 = vector.load %arg9[%c0_36, %c1_37, %c0_38, %c0_39] : memref<1x4x8x8xf32, #tpu.memory_space<vmem>>, vector<1x1x8x8xf32>
    %57 = vector.shape_cast %56 : vector<1x1x8x8xf32> to vector<8x8xf32>
    %58 = vector.shape_cast %55 : vector<8x8xf32> to vector<1x1x8x8xf32>
    tpu.vector_store %arg9[%c0_36, %c1_37, %c0_38, %c0_39], %58 {strides = array<i32>} : memref<1x4x8x8xf32, #tpu.memory_space<vmem>>, vector<1x1x8x8xf32>,
    %59 = vector.extract_strided_slice %30 {offsets = [0, 16], sizes = [8, 8], strides = [1, 1]} : vector<8x96xf32> to vector<8x8xf32>
    %cst_40 = arith.constant 0.353553385 : f32
    %60 = vector.broadcast %cst_40 : f32 to vector<8x8xf32>
    %61 = arith.mulf %59, %60 : vector<8x8xf32>
    %c0_41 = arith.constant 0 : index
    %c2 = arith.constant 2 : index
    %c0_42 = arith.constant 0 : index
    %c0_43 = arith.constant 0 : index
    %62 = vector.load %arg7[%c0_41, %c2, %c0_42, %c0_43] : memref<1x4x8x8xf32, #tpu.memory_space<vmem>>, vector<1x1x8x8xf32>
    %63 = vector.shape_cast %62 : vector<1x1x8x8xf32> to vector<8x8xf32>
    %64 = vector.shape_cast %61 : vector<8x8xf32> to vector<1x1x8x8xf32>
    tpu.vector_store %arg7[%c0_41, %c2, %c0_42, %c0_43], %64 {strides = array<i32>} : memref<1x4x8x8xf32, #tpu.memory_space<vmem>>, vector<1x1x8x8xf32>,
    %65 = vector.extract_strided_slice %30 {offsets = [0, 48], sizes = [8, 8], strides = [1, 1]} : vector<8x96xf32> to vector<8x8xf32>
    %c0_44 = arith.constant 0 : index
    %c2_45 = arith.constant 2 : index
    %c0_46 = arith.constant 0 : index
    %c0_47 = arith.constant 0 : index
    %66 = vector.load %arg8[%c0_44, %c2_45, %c0_46, %c0_47] : memref<1x4x8x8xf32, #tpu.memory_space<vmem>>, vector<1x1x8x8xf32>
    %67 = vector.shape_cast %66 : vector<1x1x8x8xf32> to vector<8x8xf32>
    %68 = vector.shape_cast %65 : vector<8x8xf32> to vector<1x1x8x8xf32>
    tpu.vector_store %arg8[%c0_44, %c2_45, %c0_46, %c0_47], %68 {strides = array<i32>} : memref<1x4x8x8xf32, #tpu.memory_space<vmem>>, vector<1x1x8x8xf32>,
    %69 = vector.extract_strided_slice %30 {offsets = [0, 80], sizes = [8, 8], strides = [1, 1]} : vector<8x96xf32> to vector<8x8xf32>
    %c0_48 = arith.constant 0 : index
    %c2_49 = arith.constant 2 : index
    %c0_50 = arith.constant 0 : index
    %c0_51 = arith.constant 0 : index
    %70 = vector.load %arg9[%c0_48, %c2_49, %c0_50, %c0_51] : memref<1x4x8x8xf32, #tpu.memory_space<vmem>>, vector<1x1x8x8xf32>
    %71 = vector.shape_cast %70 : vector<1x1x8x8xf32> to vector<8x8xf32>
    %72 = vector.shape_cast %69 : vector<8x8xf32> to vector<1x1x8x8xf32>
    tpu.vector_store %arg9[%c0_48, %c2_49, %c0_50, %c0_51], %72 {strides = array<i32>} : memref<1x4x8x8xf32, #tpu.memory_space<vmem>>, vector<1x1x8x8xf32>,
    %73 = vector.extract_strided_slice %30 {offsets = [0, 24], sizes = [8, 8], strides = [1, 1]} : vector<8x96xf32> to vector<8x8xf32>
    %cst_52 = arith.constant 0.353553385 : f32
    %74 = vector.broadcast %cst_52 : f32 to vector<8x8xf32>
    %75 = arith.mulf %73, %74 : vector<8x8xf32>
    %c0_53 = arith.constant 0 : index
    %c3 = arith.constant 3 : index
    %c0_54 = arith.constant 0 : index
    %c0_55 = arith.constant 0 : index
    %76 = vector.load %arg7[%c0_53, %c3, %c0_54, %c0_55] : memref<1x4x8x8xf32, #tpu.memory_space<vmem>>, vector<1x1x8x8xf32>
    %77 = vector.shape_cast %76 : vector<1x1x8x8xf32> to vector<8x8xf32>
    %78 = vector.shape_cast %75 : vector<8x8xf32> to vector<1x1x8x8xf32>
    tpu.vector_store %arg7[%c0_53, %c3, %c0_54, %c0_55], %78 {strides = array<i32>} : memref<1x4x8x8xf32, #tpu.memory_space<vmem>>, vector<1x1x8x8xf32>,
    %79 = vector.extract_strided_slice %30 {offsets = [0, 56], sizes = [8, 8], strides = [1, 1]} : vector<8x96xf32> to vector<8x8xf32>
    %c0_56 = arith.constant 0 : index
    %c3_57 = arith.constant 3 : index
    %c0_58 = arith.constant 0 : index
    %c0_59 = arith.constant 0 : index
    %80 = vector.load %arg8[%c0_56, %c3_57, %c0_58, %c0_59] : memref<1x4x8x8xf32, #tpu.memory_space<vmem>>, vector<1x1x8x8xf32>
    %81 = vector.shape_cast %80 : vector<1x1x8x8xf32> to vector<8x8xf32>
    %82 = vector.shape_cast %79 : vector<8x8xf32> to vector<1x1x8x8xf32>
    tpu.vector_store %arg8[%c0_56, %c3_57, %c0_58, %c0_59], %82 {strides = array<i32>} : memref<1x4x8x8xf32, #tpu.memory_space<vmem>>, vector<1x1x8x8xf32>,
    %83 = vector.extract_strided_slice %30 {offsets = [0, 88], sizes = [8, 8], strides = [1, 1]} : vector<8x96xf32> to vector<8x8xf32>
    %c0_60 = arith.constant 0 : index
    %c3_61 = arith.constant 3 : index
    %c0_62 = arith.constant 0 : index
    %c0_63 = arith.constant 0 : index
    %84 = vector.load %arg9[%c0_60, %c3_61, %c0_62, %c0_63] : memref<1x4x8x8xf32, #tpu.memory_space<vmem>>, vector<1x1x8x8xf32>
    %85 = vector.shape_cast %84 : vector<1x1x8x8xf32> to vector<8x8xf32>
    %86 = vector.shape_cast %83 : vector<8x8xf32> to vector<1x1x8x8xf32>
    tpu.vector_store %arg9[%c0_60, %c3_61, %c0_62, %c0_63], %86 {strides = array<i32>} : memref<1x4x8x8xf32, #tpu.memory_space<vmem>>, vector<1x1x8x8xf32>,
    return
  }
  func.func @transform_0(%arg0: i32, %arg1: i32) -> (i32, i32, i32) {
    %c0_i32 = arith.constant 0 : i32
    %c0_i32_0 = arith.constant 0 : i32
    return %arg0, %arg1, %c0_i32 : i32, i32, i32
  }
  func.func @transform_1(%arg0: i32, %arg1: i32) -> (i32, i32) {
    %c0_i32 = arith.constant 0 : i32
    %c0_i32_0 = arith.constant 0 : i32
    %c0_i32_1 = arith.constant 0 : i32
    return %c0_i32, %c0_i32_0 : i32, i32
  }
  func.func @transform_2(%arg0: i32, %arg1: i32) -> (i32, i32) {
    %c0_i32 = arith.constant 0 : i32
    %c0_i32_0 = arith.constant 0 : i32
    %c0_i32_1 = arith.constant 0 : i32
    return %c0_i32, %c0_i32_0 : i32, i32
  }
  func.func @transform_3(%arg0: i32, %arg1: i32) -> (i32, i32) {
    %c0_i32 = arith.constant 0 : i32
    %c0_i32_0 = arith.constant 0 : i32
    %c0_i32_1 = arith.constant 0 : i32
    return %c0_i32, %c0_i32_0 : i32, i32
  }
  func.func @transform_4(%arg0: i32, %arg1: i32) -> (i32, i32) {
    %c0_i32 = arith.constant 0 : i32
    %c0_i32_0 = arith.constant 0 : i32
    %c0_i32_1 = arith.constant 0 : i32
    return %c0_i32, %c0_i32_0 : i32, i32
  }
  func.func @transform_5(%arg0: i32, %arg1: i32) -> (i32, i32, i32, i32) {
    %c0_i32 = arith.constant 0 : i32
    %c0_i32_0 = arith.constant 0 : i32
    %c0_i32_1 = arith.constant 0 : i32
    return %arg0, %c0_i32, %arg1, %c0_i32_0 : i32, i32, i32, i32
  }
  func.func @transform_6(%arg0: i32, %arg1: i32) -> (i32, i32, i32, i32) {
    %c0_i32 = arith.constant 0 : i32
    %c0_i32_0 = arith.constant 0 : i32
    %c0_i32_1 = arith.constant 0 : i32
    return %arg0, %c0_i32, %arg1, %c0_i32_0 : i32, i32, i32, i32
  }
  func.func @transform_7(%arg0: i32, %arg1: i32) -> (i32, i32, i32, i32) {
    %c0_i32 = arith.constant 0 : i32
    %c0_i32_0 = arith.constant 0 : i32
    %c0_i32_1 = arith.constant 0 : i32
    return %arg0, %c0_i32, %arg1, %c0_i32_0 : i32, i32, i32, i32
  }
}

</mosaic_0001>

<llo_original>
// kernel: tpu_custom_call.1
$region0: #{tpu_custom_call.1}
  #allocation0 [shape = 'u32[]', space=smem, size = 0x4, offset = 0x4, fixed_abs, tag = 'smem constant byte address 0x4 - core index']
  #allocation1 [shape = 'u32[144,128]{1,0:T(1,128)}', space=vmem, size = 0x12000, scoped, tag = 'internal scratch']
  %s0 = inlined_call_operand.hbm [shape: f32[2,8,32], index: 0, kind: input, shape index: {}]
  %s1 = inlined_call_operand.vmem [shape: f32[1,32], index: 1, kind: input, shape index: {}]
  %s2 = inlined_call_operand.vmem [shape: f32[1,32], index: 2, kind: input, shape index: {}]
  %s3 = inlined_call_operand.hbm [shape: f32[32,96], index: 3, kind: input, shape index: {}]
  %s4 = inlined_call_operand.vmem [shape: f32[1,96], index: 4, kind: input, shape index: {}]
  %s5 = inlined_call_operand.hbm [shape: f32[2,4,8,8], index: 5, kind: output, shape index: {0}]
  %s6 = inlined_call_operand.hbm [shape: f32[2,4,8,8], index: 6, kind: output, shape index: {1}]
  %s7 = inlined_call_operand.hbm [shape: f32[2,4,8,8], index: 7, kind: output, shape index: {2}]
  %8 = xla_tuple %s5, %s6, %s7
  %s9 = sld [smem:[#allocation0]]
  $region77: #{tpu_custom_call.1} parent=0
    _
  %s11 = ssub.s32 1, %s9
  %s12 = scalar_select 0, %s11, %s9
  $region1: #{tpu_custom_call.1} parent=0
    #allocation2 [shape = 'u8[8192]{0}', space=vmem, size = 0x2000, scoped, tag = 'input window, operand 0']
    #allocation3 [shape = 's32[2]{0}', space=sflag, size = 0x8, scoped, tag = 'scoped memory for tpu_custom_call.1']
    #allocation4 [shape = 's32[2]{0}', space=sflag, size = 0x8, scoped, tag = 'scoped memory for tpu_custom_call.1']
    #allocation5 [shape = 'u8[16384]{0}', space=vmem, size = 0x4000, scoped, tag = 'input window, operand 3, single buffered']
    #allocation6 [shape = 's32[1]{0}', space=sflag, size = 0x4, scoped, tag = 'scoped memory for tpu_custom_call.1']
    #allocation7 [shape = 'u8[32768]{0}', space=vmem, size = 0x8000, scoped, tag = 'output window, operand 0']
    #allocation8 [shape = 'u8[32768]{0}', space=vmem, size = 0x8000, scoped, tag = 'output window, operand 1']
    #allocation9 [shape = 's32[2]{0}', space=sflag, size = 0x8, scoped, tag = 'scoped memory for tpu_custom_call.1']
    #allocation10 [shape = 'u8[32768]{0}', space=vmem, size = 0x8000, scoped, tag = 'output window, operand 2']
    %13 = vsyncpa [#allocation3], 0
    %s14 = scalar_lea.sflag [#allocation3], 1
    %15 = vsyncpa %s14, 0
    %16 = vsyncpa [#allocation6], 0
    %17 = vsyncpa [#allocation4], 0
    %s18 = scalar_lea.sflag [#allocation4], 1
    %19 = vsyncpa %s18, 0
    %20 = vsyncpa [#allocation9], 0
    %s21 = scalar_lea.sflag [#allocation9], 1
    %22 = vsyncpa %s21, 0
    loop: start=0, step=1, limit=4
    $region2: #{tpu_custom_call.1} parent=1 // loop_pre_header
      _
    $region3: #{tpu_custom_call.1} parent=1 // loop_header
      %s24 = sphi 0, %s28
      %p25 = scmp.ge.s32.totalorder %s24, 4
      %s31 = sphi 0, %s43
      %s32 = sphi 0, %s39
      %s33 = sphi 0, %s31
      %s34 = sphi 0, %s32
      %s35 = sphi 0, %s33
      %s36 = sphi 0, %s34
      %s48 = sphi 0, %s50
      %s51 = sphi 0, %s48
      %s52 = sphi 0, %s51
      %s68 = sphi 0, %s52
      %s72 = sphi 0, %s72
      %s74 = sphi 0, %s72
      %s75 = sphi 0, %s74
      %s89 = sphi 0, %s75
      %s93 = sphi 0, %s93
      %s95 = sphi 0, %s93
      %s96 = sphi 0, %s95
      %s110 = sphi 0, %s96
      %s114 = sphi 0, %s114
      %s116 = sphi 0, %s114
      %s117 = sphi 0, %s116
      %s131 = sphi 0, %s117
      %s135 = sphi 0, %s135
      %s137 = sphi 0, %s135
      %s138 = sphi 0, %s137
      %s152 = sphi 0, %s138
      %s160 = sphi 0, %s162
      %s163 = sphi 0, %s160
      %s164 = sphi 0, %s163
      %s180 = sphi 0, %s164
      %s188 = sphi 0, %s190
      %s191 = sphi 0, %s188
      %s192 = sphi 0, %s191
      %s208 = sphi 0, %s192
      %s216 = sphi 0, %s218
      %s219 = sphi 0, %s216
      %s220 = sphi 0, %s219
      %s236 = sphi 0, %s220
    $region4: #{tpu_custom_call.1} parent=1 // loop_header_branch
      %27 = sbr.rel (%p25) target = $region8
    $region5: #{tpu_custom_call.1} parent=1 // loop_body
      %s29 = ssub.s32 %s24, 1
      %s30 = ssub.s32 %s24, 2
      %s37 = sadd.s32 1, %s32
      %p38 = scmp.ge.s32.totalorder %s37, 1
      %s39 = scalar_select %p38, 0, %s37
      %s40 = sadd.s32 1, %s31
      %s41 = scalar_select %p38, %s40, %s31
      %p42 = scmp.ge.s32.totalorder %s41, 2
      %s43 = scalar_select %p42, 0, %s41
      %s44 = ssub.s32 %s31, %s43
      %s45 = ssub.s32 %s32, %s39
      %s46 = sor.u32 %s44, %s45
      %p47 = scmp.eq.s32.totalorder %s46, 0
      %s49 = sadd.s32 %s48, 1
      %s50 = scalar_select %p47, %s48, %s49
      %p53 = pneg %p47
      %p54 = scmp.eq.s32.totalorder %s24, 1
      %p55 = por %p53, %p54
      %p56 = scmp.ne.s32.totalorder %s48, %s51
      %p57 = scmp.eq.s32.totalorder %s24, 0
      %p58 = por %p56, %p57
      %p59 = scmp.ne.s32.totalorder %s48, %s51
      %p60 = scmp.eq.s32.totalorder %s29, 1
      %p61 = por %p59, %p60
      %p62 = scmp.ne.s32.totalorder %s51, %s52
      %p63 = scmp.eq.s32.totalorder %s29, 0
      %p64 = por %p62, %p63
      %p65 = scmp.ne.s32.totalorder %s51, %s52
      %p66 = scmp.eq.s32.totalorder %s30, 1
      %p67 = por %p65, %p66
      %p69 = scmp.ne.s32.totalorder %s52, %s68
      %p70 = scmp.eq.s32.totalorder %s30, 0
      %p71 = por %p69, %p70
      %s73 = sadd.s32 %s72, 1
      %p76 = scmp.eq.s32.totalorder %s24, 1
      %p77 = scmp.ne.s32.totalorder %s72, %s74
      %p78 = scmp.eq.s32.totalorder %s24, 0
      %p79 = por %p77, %p78
      %p80 = scmp.ne.s32.totalorder %s72, %s74
      %p81 = scmp.eq.s32.totalorder %s29, 1
      %p82 = por %p80, %p81
      %p83 = scmp.ne.s32.totalorder %s74, %s75
      %p84 = scmp.eq.s32.totalorder %s29, 0
      %p85 = por %p83, %p84
      %p86 = scmp.ne.s32.totalorder %s74, %s75
      %p87 = scmp.eq.s32.totalorder %s30, 1
      %p88 = por %p86, %p87
      %p90 = scmp.ne.s32.totalorder %s75, %s89
      %p91 = scmp.eq.s32.totalorder %s30, 0
      %p92 = por %p90, %p91
      %s94 = sadd.s32 %s93, 1
      %p97 = scmp.eq.s32.totalorder %s24, 1
      %p98 = scmp.ne.s32.totalorder %s93, %s95
      %p99 = scmp.eq.s32.totalorder %s24, 0
      %p100 = por %p98, %p99
      %p101 = scmp.ne.s32.totalorder %s93, %s95
      %p102 = scmp.eq.s32.totalorder %s29, 1
      %p103 = por %p101, %p102
      %p104 = scmp.ne.s32.totalorder %s95, %s96
      %p105 = scmp.eq.s32.totalorder %s29, 0
      %p106 = por %p104, %p105
      %p107 = scmp.ne.s32.totalorder %s95, %s96
      %p108 = scmp.eq.s32.totalorder %s30, 1
      %p109 = por %p107, %p108
      %p111 = scmp.ne.s32.totalorder %s96, %s110
      %p112 = scmp.eq.s32.totalorder %s30, 0
      %p113 = por %p111, %p112
      %s115 = sadd.s32 %s114, 1
      %p118 = scmp.eq.s32.totalorder %s24, 1
      %p119 = scmp.ne.s32.totalorder %s114, %s116
      %p120 = scmp.eq.s32.totalorder %s24, 0
      %p121 = por %p119, %p120
      %p122 = scmp.ne.s32.totalorder %s114, %s116
      %p123 = scmp.eq.s32.totalorder %s29, 1
      %p124 = por %p122, %p123
      %p125 = scmp.ne.s32.totalorder %s116, %s117
      %p126 = scmp.eq.s32.totalorder %s29, 0
      %p127 = por %p125, %p126
      %p128 = scmp.ne.s32.totalorder %s116, %s117
      %p129 = scmp.eq.s32.totalorder %s30, 1
      %p130 = por %p128, %p129
      %p132 = scmp.ne.s32.totalorder %s117, %s131
      %p133 = scmp.eq.s32.totalorder %s30, 0
      %p134 = por %p132, %p133
      %s136 = sadd.s32 %s135, 1
      %p139 = scmp.eq.s32.totalorder %s24, 1
      %p140 = scmp.ne.s32.totalorder %s135, %s137
      %p141 = scmp.eq.s32.totalorder %s24, 0
      %p142 = por %p140, %p141
      %p143 = scmp.ne.s32.totalorder %s135, %s137
      %p144 = scmp.eq.s32.totalorder %s29, 1
      %p145 = por %p143, %p144
      %p146 = scmp.ne.s32.totalorder %s137, %s138
      %p147 = scmp.eq.s32.totalorder %s29, 0
      %p148 = por %p146, %p147
      %p149 = scmp.ne.s32.totalorder %s137, %s138
      %p150 = scmp.eq.s32.totalorder %s30, 1
      %p151 = por %p149, %p150
      %p153 = scmp.ne.s32.totalorder %s138, %s152
      %p154 = scmp.eq.s32.totalorder %s30, 0
      %p155 = por %p153, %p154
      %s156 = ssub.s32 %s31, %s43
      %s157 = ssub.s32 %s32, %s39
      %s158 = sor.u32 %s156, %s157
      %p159 = scmp.eq.s32.totalorder %s158, 0
      %s161 = sadd.s32 %s160, 1
      %s162 = scalar_select %p159, %s160, %s161
      %p165 = pneg %p159
      %p166 = scmp.eq.s32.totalorder %s24, 1
      %p167 = por %p165, %p166
      %p168 = scmp.ne.s32.totalorder %s160, %s163
      %p169 = scmp.eq.s32.totalorder %s24, 0
      %p170 = por %p168, %p169
      %p171 = scmp.ne.s32.totalorder %s160, %s163
      %p172 = scmp.eq.s32.totalorder %s29, 1
      %p173 = por %p171, %p172
      %p174 = scmp.ne.s32.totalorder %s163, %s164
      %p175 = scmp.eq.s32.totalorder %s29, 0
      %p176 = por %p174, %p175
      %p177 = scmp.ne.s32.totalorder %s163, %s164
      %p178 = scmp.eq.s32.totalorder %s30, 1
      %p179 = por %p177, %p178
      %p181 = scmp.ne.s32.totalorder %s164, %s180
      %p182 = scmp.eq.s32.totalorder %s30, 0
      %p183 = por %p181, %p182
      %s184 = ssub.s32 %s31, %s43
      %s185 = ssub.s32 %s32, %s39
      %s186 = sor.u32 %s184, %s185
      %p187 = scmp.eq.s32.totalorder %s186, 0
      %s189 = sadd.s32 %s188, 1
      %s190 = scalar_select %p187, %s188, %s189
      %p193 = pneg %p187
      %p194 = scmp.eq.s32.totalorder %s24, 1
      %p195 = por %p193, %p194
      %p196 = scmp.ne.s32.totalorder %s188, %s191
      %p197 = scmp.eq.s32.totalorder %s24, 0
      %p198 = por %p196, %p197
      %p199 = scmp.ne.s32.totalorder %s188, %s191
      %p200 = scmp.eq.s32.totalorder %s29, 1
      %p201 = por %p199, %p200
      %p202 = scmp.ne.s32.totalorder %s191, %s192
      %p203 = scmp.eq.s32.totalorder %s29, 0
      %p204 = por %p202, %p203
      %p205 = scmp.ne.s32.totalorder %s191, %s192
      %p206 = scmp.eq.s32.totalorder %s30, 1
      %p207 = por %p205, %p206
      %p209 = scmp.ne.s32.totalorder %s192, %s208
      %p210 = scmp.eq.s32.totalorder %s30, 0
      %p211 = por %p209, %p210
      %s212 = ssub.s32 %s31, %s43
      %s213 = ssub.s32 %s32, %s39
      %s214 = sor.u32 %s212, %s213
      %p215 = scmp.eq.s32.totalorder %s214, 0
      %s217 = sadd.s32 %s216, 1
      %s218 = scalar_select %p215, %s216, %s217
      %p221 = pneg %p215
      %p222 = scmp.eq.s32.totalorder %s24, 1
      %p223 = por %p221, %p222
      %p224 = scmp.ne.s32.totalorder %s216, %s219
      %p225 = scmp.eq.s32.totalorder %s24, 0
      %p226 = por %p224, %p225
      %p227 = scmp.ne.s32.totalorder %s216, %s219
      %p228 = scmp.eq.s32.totalorder %s29, 1
      %p229 = por %p227, %p228
      %p230 = scmp.ne.s32.totalorder %s219, %s220
      %p231 = scmp.eq.s32.totalorder %s29, 0
      %p232 = por %p230, %p231
      %p233 = scmp.ne.s32.totalorder %s219, %s220
      %p234 = scmp.eq.s32.totalorder %s30, 1
      %p235 = por %p233, %p234
      %p237 = scmp.ne.s32.totalorder %s220, %s236
      %p238 = scmp.eq.s32.totalorder %s30, 0
      %p239 = por %p237, %p238
      %p240 = scmp.le.s32.totalorder 1, %s24
      %p241 = scmp.lt.s32.totalorder %s24, 3
      %p242 = pnand %p240, %p241
      %p243 = pneg %p242
      // Predicated region
      $region9: #{tpu_custom_call.1} parent=5 // pred_check
        _
      $region10: #{tpu_custom_call.1} parent=5 // pred_check_branch
        %245 = sbr.rel (%p242) target = $region12
      $region11: #{tpu_custom_call.1} parent=5 // pred_region
        %s246 = ssub.s32 %s24, 1
        // Predicated region
        $region13: #{tpu_custom_call.1} parent=11 // pred_check
          %p247 = pneg %p85
        $region14: #{tpu_custom_call.1} parent=11 // pred_check_branch
          %249 = sbr.rel (%p247) target = $region16
        $region15: #{tpu_custom_call.1} parent=11 // pred_region
          _
        $region16: #{tpu_custom_call.1} parent=11 // pred_fallthru
          _
        // Predicated region
        $region17: #{tpu_custom_call.1} parent=11 // pred_check
          %p250 = pneg %p106
        $region18: #{tpu_custom_call.1} parent=11 // pred_check_branch
          %252 = sbr.rel (%p250) target = $region20
        $region19: #{tpu_custom_call.1} parent=11 // pred_region
          _
        $region20: #{tpu_custom_call.1} parent=11 // pred_fallthru
          _
        // Predicated region
        $region21: #{tpu_custom_call.1} parent=11 // pred_check
          %p253 = pneg %p127
        $region22: #{tpu_custom_call.1} parent=11 // pred_check_branch
          %255 = sbr.rel (%p253) target = $region24
        $region23: #{tpu_custom_call.1} parent=11 // pred_region
          %s257 = ssub.s32 512, 512
          %258 = vsyncadd [#allocation6], %s257
          %s259 = sshll.u32 [#allocation5], 4
          %s260 = int_to_ptr.vmem [resolvable:$true] %s259
          %265 = dma.hbm_to_vmem [thread:$0]  %s3, 512, %s260, [#allocation6], 128, 128, 8
        $region24: #{tpu_custom_call.1} parent=11 // pred_fallthru
          _
        // Predicated region
        $region25: #{tpu_custom_call.1} parent=11 // pred_check
          %p266 = pneg %p148
        $region26: #{tpu_custom_call.1} parent=11 // pred_check_branch
          %268 = sbr.rel (%p266) target = $region28
        $region27: #{tpu_custom_call.1} parent=11 // pred_region
          _
        $region28: #{tpu_custom_call.1} parent=11 // pred_fallthru
          _
      $region12: #{tpu_custom_call.1} parent=5 // pred_fallthru
        _
      %p269 = scmp.lt.s32.totalorder %s24, 2
      // Predicated region
      $region29: #{tpu_custom_call.1} parent=5 // pred_check
        %p270 = pneg %p269
      $region30: #{tpu_custom_call.1} parent=5 // pred_check_branch
        %272 = sbr.rel (%p270) target = $region32
      $region31: #{tpu_custom_call.1} parent=5 // pred_region
        // Predicated region
        $region33: #{tpu_custom_call.1} parent=31 // pred_check
          %p273 = pneg %p58
        $region34: #{tpu_custom_call.1} parent=31 // pred_check_branch
          %275 = sbr.rel (%p273) target = $region36
        $region35: #{tpu_custom_call.1} parent=31 // pred_region
          %s276 = sand.u32 %s48, 1
          %s277 = scalar_lea.sflag [#allocation3], %s276
          %s278 = sand.u32 %s48, 1
          %s279 = smul.addr %s278, 8
          %s280 = scalar_lea.vmem [#allocation2], %s279
          %s282 = ssub.s32 128, 128
          %283 = vsyncadd %s277, %s282
          %s284 = sadd.s32 %s32, %s31
          %s285 = smul.addr %s284, 128
          %s286 = scalar_lea.hbm %s0, %s285
          %s288 = sshll.u32 %s280, 4
          %s289 = int_to_ptr.vmem [resolvable:$true] %s288
          %291 = dma.hbm_to_vmem [thread:$0]  %s286, 128, %s289, %s277
        $region36: #{tpu_custom_call.1} parent=31 // pred_fallthru
          _
      $region32: #{tpu_custom_call.1} parent=5 // pred_fallthru
        _
      %p292 = scmp.le.s32.totalorder 1, %s24
      %p293 = scmp.lt.s32.totalorder %s24, 3
      %p294 = pnand %p292, %p293
      %p295 = pneg %p294
      // Predicated region
      $region37: #{tpu_custom_call.1} parent=5 // pred_check
        _
      $region38: #{tpu_custom_call.1} parent=5 // pred_check_branch
        %297 = sbr.rel (%p294) target = $region40
      $region39: #{tpu_custom_call.1} parent=5 // pred_region
        %s298 = ssub.s32 %s24, 1
        %s299 = sand.u32 %s51, 1
        %s300 = scalar_lea.sflag [#allocation3], %s299
        %s301 = sand.u32 %s51, 1
        %s302 = smul.addr %s301, 8
        %s303 = scalar_lea.vmem [#allocation2], %s302
        // Predicated region
        $region41: #{tpu_custom_call.1} parent=39 // pred_check
          %p304 = pneg %p64
        $region42: #{tpu_custom_call.1} parent=39 // pred_check_branch
          %306 = sbr.rel (%p304) target = $region44
        $region43: #{tpu_custom_call.1} parent=39 // pred_region
          %307 = dma.done %s300, 128
        $region44: #{tpu_custom_call.1} parent=39 // pred_fallthru
          _
        // Predicated region
        $region45: #{tpu_custom_call.1} parent=39 // pred_check
          %p308 = pneg %p127
        $region46: #{tpu_custom_call.1} parent=39 // pred_check_branch
          %310 = sbr.rel (%p308) target = $region48
        $region47: #{tpu_custom_call.1} parent=39 // pred_region
          %311 = dma.done [#allocation6], 512
        $region48: #{tpu_custom_call.1} parent=39 // pred_fallthru
          _
        %s312 = sand.u32 %s51, 1
        %s313 = scalar_lea.sflag [#allocation3], %s312
        %s314 = sand.u32 %s51, 1
        %s315 = smul.addr %s314, 8
        %s316 = scalar_lea.vmem [#allocation2], %s315
        %p317 = pneg %p64
        %p318 = pneg %p61
        %p319 = pneg %p85
        %p320 = pneg %p82
        %p321 = pneg %p106
        %p322 = pneg %p103
        %p323 = pneg %p127
        %p324 = pneg %p124
        %p325 = pneg %p148
        %p326 = pneg %p145
        %p327 = pneg %p176
        %p328 = pneg %p173
        %s329 = sand.u32 %s163, 1
        %s330 = scalar_lea.sflag [#allocation4], %s329
        %s331 = sand.u32 %s163, 1
        %s332 = smul.addr %s331, 32
        %s333 = scalar_lea.vmem [#allocation7], %s332
        %p334 = pneg %p204
        %p335 = pneg %p201
        %s336 = sand.u32 %s29, 1
        %s337 = scalar_lea.sflag [#allocation9], %s336
        %s338 = sand.u32 %s191, 1
        %s339 = smul.addr %s338, 32
        %s340 = scalar_lea.vmem [#allocation8], %s339
        %p341 = pneg %p232
        %p342 = pneg %p229
        %s343 = sand.u32 %s29, 1
        %s344 = scalar_lea.sflag [#allocation9], %s343
        %s345 = sand.u32 %s219, 1
        %s346 = smul.addr %s345, 32
        %s347 = scalar_lea.vmem [#allocation10], %s346
        %v348 = vld [vmem:[%s303] sm:$0xff]
        %v349 = vld [vmem:[%s1] sm:$0x1]
        %v350 = vld [vmem:[%s2] sm:$0x1]
        %vm351 = vcmask 261120
        %v352 = vsel %vm351, %v348, 0.0
        %353 = vadd.xlane.f32.xlu0 %v352
        %v354 = vpop.xlane.xlu0 %353
        %v355 = vrcp.pop 32.0
        %v356 = vmul.f32 %v354, %v355
        %v357 = vsub.f32 %v348, %v356
        %v358 = vmul.f32 %v357, %v357
        %v359 = vsel %vm351, %v358, 0.0
        %360 = vadd.xlane.f32.xlu0 %v359
        %v361 = vpop.xlane.xlu0 %360
        %v362 = vmul.f32 %v361, %v355
        %v363 = vadd.f32 %v362, 1e-05
        %v364 = vrsqrt.pop %v363
        %v365 = vmul.f32 %v357, %v364
        %v367 = vlaneseq
        %v368 = vshrl.u32 %v367, 7
        %v369 = vsub.s32 0, %v368
        %v370 = vrot.slane %v349, %v369
        %v372 = vmul.f32 %v365, %v370
        %v374 = vlaneseq
        %v375 = vshrl.u32 %v374, 7
        %v376 = vsub.s32 0, %v375
        %v377 = vrot.slane %v350, %v376
        %v379 = vadd.f32 %v372, %v377
        %v380 = vld [vmem:[#allocation5] sm:$0xff]
        %v381 = vld [vmem:[#allocation5 + $0x8] sm:$0xff]
        %v382 = vld [vmem:[#allocation5 + $0x10] sm:$0xff]
        %v383 = vld [vmem:[#allocation5 + $0x18] sm:$0xff]
        %v384 = vld [vmem:[%s4] sm:$0x1]
        %v386 = vlaneseq
        %v387 = vshrl.u32 %v386, 7
        %v388 = vsub.s32 0, %v387
        %v389 = vrot.slane %v384, %v388
        %v392 = vsel %vm351, %v379, 0
        %394 = vmatprep.subr.mxu0 0.0
        %395 = vmatpush1.msra.mxu0 %v380
        %396 = vmatprep.subr.mxu0 0.0
        %397 = vmatpush1.msra.mxu0 %v381
        %398 = vmatprep.subr.mxu0 0.0
        %399 = vmatpush1.msra.mxu0 %v382
        %400 = vmatprep.subr.mxu0 0.0
        %401 = vmatpush1.msra.mxu0 %v383
        %402 = vmatprep.subr.mxu0 0.0
        %403 = vmatpush1.msra.mxu0 0.0
        %404 = vmatprep.subr.mxu0 0.0
        %405 = vmatpush1.msra.mxu0 0.0
        %406 = vmatprep.subr.mxu0 0.0
        %407 = vmatpush1.msra.mxu0 0.0
        %408 = vmatprep.subr.mxu0 0.0
        %409 = vmatpush1.msra.mxu0 0.0
        %410 = vmatprep.subr.mxu0 0.0
        %411 = vmatpush1.msra.mxu0 0.0
        %412 = vmatprep.subr.mxu0 0.0
        %413 = vmatpush1.msra.mxu0 0.0
        %414 = vmatprep.subr.mxu0 0.0
        %415 = vmatpush1.msra.mxu0 0.0
        %416 = vmatprep.subr.mxu0 0.0
        %417 = vmatpush1.msra.mxu0 0.0
        %418 = vmatprep.subr.mxu0 0.0
        %419 = vmatpush1.msra.mxu0 0.0
        %420 = vmatprep.subr.mxu0 0.0
        %421 = vmatpush1.msra.mxu0 0.0
        %422 = vmatprep.subr.mxu0 0.0
        %423 = vmatpush1.msra.mxu0 0.0
        %424 = vmatprep.subr.mxu0 0.0
        %425 = vmatpush1.msra.mxu0 0.0
        %426 = vmatprep.subr.mxu0 0.0
        %427 = vmatpush1.msra.mxu0 0.0
        %428 = vmatprep.subr.mxu0 0.0
        %429 = vmatpush1.msra.mxu0 0.0
        %430 = vmatprep.subr.mxu0 0.0
        %431 = vmatpush1.msra.mxu0 0.0
        %432 = vmatprep.subr.mxu0 0.0
        %433 = vmatpush1.msra.mxu0 0.0
        %434 = vmatprep.subr.mxu0 0.0
        %435 = vmatpush1.msra.mxu0 0.0
        %436 = vmatprep.subr.mxu0 0.0
        %437 = vmatpush1.msra.mxu0 0.0
        %438 = vmatprep.subr.mxu0 0.0
        %439 = vmatpush1.msra.mxu0 0.0
        %440 = vmatprep.subr.mxu0 0.0
        %441 = vmatpush1.msra.mxu0 0.0
        %442 = vmatprep.subr.mxu0 0.0
        %443 = vmatpush1.msra.mxu0 0.0
        %444 = vmatprep.subr.mxu0 0.0
        %445 = vmatpush1.msra.mxu0 0.0
        %446 = vmatprep.subr.mxu0 0.0
        %447 = vmatpush1.msra.mxu0 0.0
        %448 = vmatprep.subr.mxu0 0.0
        %449 = vmatpush1.msra.mxu0 0.0
        %450 = vmatprep.subr.mxu0 0.0
        %451 = vmatpush1.msra.mxu0 0.0
        %452 = vmatprep.subr.mxu0 0.0
        %453 = vmatpush1.msra.mxu0 0.0
        %454 = vmatprep.subr.mxu0 0.0
        %455 = vmatpush1.msra.mxu0 0.0
        %456 = vmatprep.subr.mxu0 0.0
        %457 = vmatpush1.msra.mxu0 0.0
        %458 = vmatprep.mubr.f32.mxu0 0.0
        %459 = vmatmul.mubr.f32.gmra.mrb[0].mxu0 %v392
        %v460 = vpop.f32.mrb[0].mxu0
        %v461 = vadd.f32 %v389, %v460
        %v462 = vpop.f32.mrb[0].mxu0
        %463 = vdwg.mxu0
        %v464 = vmul.f32 %v461, 0.35355338
        %vm465 = vcmask 64512
        %466 = vst.msk [vmem:[%s333] sm:$0xff] %vm465, %v464
        %468 = vrot.lane.b32.xlu0 %v461, 96
        %v469 = vpop.permute.xlu0 %468
        %471 = vst.msk [vmem:[%s340] sm:$0xff] %vm465, %v469
        %472 = vrot.lane.b32.xlu0 %v461, 64
        %v473 = vpop.permute.xlu0 %472
        %475 = vst.msk [vmem:[%s347] sm:$0xff] %vm465, %v473
        %477 = vrot.lane.b32.xlu0 %v464, 120
        %v478 = vpop.permute.xlu0 %477
        %s480 = scalar_lea.vmem %s333, 8 [#allocation7]
        %481 = vst.msk [vmem:[%s480] sm:$0xff] %vm465, %v478
        %482 = vrot.lane.b32.xlu0 %v461, 88
        %v483 = vpop.permute.xlu0 %482
        %s485 = scalar_lea.vmem %s340, 8 [#allocation8]
        %486 = vst.msk [vmem:[%s485] sm:$0xff] %vm465, %v483
        %487 = vrot.lane.b32.xlu0 %v461, 56
        %v488 = vpop.permute.xlu0 %487
        %s490 = scalar_lea.vmem %s347, 8 [#allocation10]
        %491 = vst.msk [vmem:[%s490] sm:$0xff] %vm465, %v488
        %492 = vrot.lane.b32.xlu0 %v464, 112
        %v493 = vpop.permute.xlu0 %492
        %s495 = scalar_lea.vmem %s333, 16 [#allocation7]
        %496 = vst.msk [vmem:[%s495] sm:$0xff] %vm465, %v493
        %497 = vrot.lane.b32.xlu0 %v461, 80
        %v498 = vpop.permute.xlu0 %497
        %s500 = scalar_lea.vmem %s340, 16 [#allocation8]
        %501 = vst.msk [vmem:[%s500] sm:$0xff] %vm465, %v498
        %502 = vrot.lane.b32.xlu0 %v461, 48
        %v503 = vpop.permute.xlu0 %502
        %s505 = scalar_lea.vmem %s347, 16 [#allocation10]
        %506 = vst.msk [vmem:[%s505] sm:$0xff] %vm465, %v503
        %507 = vrot.lane.b32.xlu0 %v464, 104
        %v508 = vpop.permute.xlu0 %507
        %s510 = scalar_lea.vmem %s333, 24 [#allocation7]
        %511 = vst.msk [vmem:[%s510] sm:$0xff] %vm465, %v508
        %512 = vrot.lane.b32.xlu0 %v461, 72
        %v513 = vpop.permute.xlu0 %512
        %s515 = scalar_lea.vmem %s340, 24 [#allocation8]
        %516 = vst.msk [vmem:[%s515] sm:$0xff] %vm465, %v513
        %517 = vrot.lane.b32.xlu0 %v461, 40
        %v518 = vpop.permute.xlu0 %517
        %s520 = scalar_lea.vmem %s347, 24 [#allocation10]
        %521 = vst.msk [vmem:[%s520] sm:$0xff] %vm465, %v518
        %s522 = sand.u32 %s163, 1
        %s523 = scalar_lea.sflag [#allocation4], %s522
        %s524 = sand.u32 %s163, 1
        %s525 = smul.addr %s524, 32
        %s526 = scalar_lea.vmem [#allocation7], %s525
        %s527 = sand.u32 %s29, 1
        %s528 = scalar_lea.sflag [#allocation9], %s527
        %s529 = sand.u32 %s191, 1
        %s530 = smul.addr %s529, 32
        %s531 = scalar_lea.vmem [#allocation8], %s530
        %s532 = sand.u32 %s29, 1
        %s533 = scalar_lea.sflag [#allocation9], %s532
        %s534 = sand.u32 %s219, 1
        %s535 = smul.addr %s534, 32
        %s536 = scalar_lea.vmem [#allocation10], %s535
        // Predicated region
        $region49: #{tpu_custom_call.1} parent=39 // pred_check
          %p537 = pneg %p173
        $region50: #{tpu_custom_call.1} parent=39 // pred_check_branch
          %539 = sbr.rel (%p537) target = $region52
        $region51: #{tpu_custom_call.1} parent=39 // pred_region
          %s541 = ssub.s32 512, 512
          %542 = vsyncadd %s523, %s541
          %s543 = smul.addr %s33, 4
          %s544 = sadd.s32 %s34, %s543
          %s545 = smul.addr %s544, 128
          %s546 = scalar_lea.hbm %s5, %s545
          %s547 = sshll.u32 %s526, 4
          %s548 = int_to_ptr.vmem [resolvable:$true] %s547
          %553 = dma.vmem_to_hbm [thread:$0]  %s548, 512, %s546, %s523, 128, 128, 8
        $region52: #{tpu_custom_call.1} parent=39 // pred_fallthru
          _
        // Predicated region
        $region53: #{tpu_custom_call.1} parent=39 // pred_check
          %p554 = pneg %p201
        $region54: #{tpu_custom_call.1} parent=39 // pred_check_branch
          %556 = sbr.rel (%p554) target = $region56
        $region55: #{tpu_custom_call.1} parent=39 // pred_region
          %s558 = ssub.s32 512, 512
          %559 = vsyncadd %s528, %s558
          %s560 = smul.addr %s33, 4
          %s561 = sadd.s32 %s34, %s560
          %s562 = smul.addr %s561, 128
          %s563 = scalar_lea.hbm %s6, %s562
          %s564 = sshll.u32 %s531, 4
          %s565 = int_to_ptr.vmem [resolvable:$true] %s564
          %570 = dma.vmem_to_hbm [thread:$0]  %s565, 512, %s563, %s528, 128, 128, 8
        $region56: #{tpu_custom_call.1} parent=39 // pred_fallthru
          _
        // Predicated region
        $region57: #{tpu_custom_call.1} parent=39 // pred_check
          %p571 = pneg %p229
        $region58: #{tpu_custom_call.1} parent=39 // pred_check_branch
          %573 = sbr.rel (%p571) target = $region60
        $region59: #{tpu_custom_call.1} parent=39 // pred_region
          %s575 = ssub.s32 512, 512
          %576 = vsyncadd %s533, %s575
          %s577 = smul.addr %s33, 4
          %s578 = sadd.s32 %s34, %s577
          %s579 = smul.addr %s578, 128
          %s580 = scalar_lea.hbm %s7, %s579
          %s581 = sshll.u32 %s536, 4
          %s582 = int_to_ptr.vmem [resolvable:$true] %s581
          %587 = dma.vmem_to_hbm [thread:$0]  %s582, 512, %s580, %s533, 128, 128, 8
        $region60: #{tpu_custom_call.1} parent=39 // pred_fallthru
          _
      $region40: #{tpu_custom_call.1} parent=5 // pred_fallthru
        _
      %p588 = scmp.le.s32.totalorder 2, %s24
      // Predicated region
      $region61: #{tpu_custom_call.1} parent=5 // pred_check
        %p589 = pneg %p588
      $region62: #{tpu_custom_call.1} parent=5 // pred_check_branch
        %591 = sbr.rel (%p589) target = $region64
      $region63: #{tpu_custom_call.1} parent=5 // pred_region
        %s592 = ssub.s32 %s24, 2
        // Predicated region
        $region65: #{tpu_custom_call.1} parent=63 // pred_check
          %p593 = pneg %p179
        $region66: #{tpu_custom_call.1} parent=63 // pred_check_branch
          %595 = sbr.rel (%p593) target = $region68
        $region67: #{tpu_custom_call.1} parent=63 // pred_region
          %s596 = sand.u32 %s164, 1
          %s597 = scalar_lea.sflag [#allocation4], %s596
          %s598 = sand.u32 %s164, 1
          %s599 = smul.addr %s598, 32
          %s600 = scalar_lea.vmem [#allocation7], %s599
          %601 = dma.done %s597, 512
        $region68: #{tpu_custom_call.1} parent=63 // pred_fallthru
          _
        // Predicated region
        $region69: #{tpu_custom_call.1} parent=63 // pred_check
          %p602 = pneg %p207
        $region70: #{tpu_custom_call.1} parent=63 // pred_check_branch
          %604 = sbr.rel (%p602) target = $region72
        $region71: #{tpu_custom_call.1} parent=63 // pred_region
          %s605 = sand.u32 %s30, 1
          %s606 = scalar_lea.sflag [#allocation9], %s605
          %s607 = sand.u32 %s192, 1
          %s608 = smul.addr %s607, 32
          %s609 = scalar_lea.vmem [#allocation8], %s608
          %610 = dma.done %s606, 512
        $region72: #{tpu_custom_call.1} parent=63 // pred_fallthru
          _
        // Predicated region
        $region73: #{tpu_custom_call.1} parent=63 // pred_check
          %p611 = pneg %p235
        $region74: #{tpu_custom_call.1} parent=63 // pred_check_branch
          %613 = sbr.rel (%p611) target = $region76
        $region75: #{tpu_custom_call.1} parent=63 // pred_region
          %s614 = sand.u32 %s30, 1
          %s615 = scalar_lea.sflag [#allocation9], %s614
          %s616 = sand.u32 %s220, 1
          %s617 = smul.addr %s616, 32
          %s618 = scalar_lea.vmem [#allocation10], %s617
          %619 = dma.done %s615, 512
        $region76: #{tpu_custom_call.1} parent=63 // pred_fallthru
          _
      $region64: #{tpu_custom_call.1} parent=5 // pred_fallthru
        _
    $region6: #{tpu_custom_call.1} parent=1 // loop_footer
      %s28 = sadd.s32 1, %s24
    $region7: #{tpu_custom_call.1} parent=1 // loop_footer_branch
      %23 = sbr.rel target = $region3
    $region8: #{tpu_custom_call.1} parent=1 // loop_exit
      _
    %620 = vsyncpa [#allocation3], 1
    %s621 = scalar_lea.sflag [#allocation3], 1
    %622 = vsyncpa %s621, 1
    %623 = vsyncpa [#allocation6], 1
    %624 = vsyncpa [#allocation4], 1
    %s625 = scalar_lea.sflag [#allocation4], 1
    %626 = vsyncpa %s625, 1
    %627 = vsyncpa [#allocation9], 1
    %s628 = scalar_lea.sflag [#allocation9], 1
    %629 = vsyncpa %s628, 1

</llo_original>
